<compile_context>
chip_gen: v6e
topology: v6e:2x2x1
jax: 0.10.0
libtpu: 0.0.40
codegen_flags: <defaults>
</compile_context>

<pallas_src>
import functools

import jax
import jax.numpy as jnp
from jax.experimental import pallas as pl
from jax.experimental.pallas import tpu as pltpu


# ------------------------------ tiling helpers ------------------------------ #

def _row_tile(m, cap=256):
    # cap is a multiple of 8, so partial trailing blocks are legal (masked stores).
    return m if m <= cap else cap


def _q_tile(sq, cap=128):
    return sq if sq <= cap else cap


def _kv_tile(skv, heads, dim_head, itemsize, budget=8 * 1024 * 1024):
    # Largest divisor of skv whose double-buffered (2, H, tk, Dh) KV block fits
    # the VMEM budget.  A divisor is required so no garbage KV rows reach the
    # softmax (no masking path needed).  Fallback: whole KV sequence per block.
    for t in (1024, 512, 256, 128, 64, 32, 16, 8):
        if t <= skv and skv % t == 0:
            if 2 * heads * t * dim_head * itemsize * 2 <= budget:
                return t
    return skv


# --------------- projection kernel: lane-dense matmul, head-split store ------ #

def _proj_heads_kernel(x_ref, w_ref, o_ref, *, groups, dim_head):
    # Full-width MXU matmul (best MXU utilization), split per head only on store.
    acc = jnp.dot(x_ref[...], w_ref[...], preferred_element_type=jnp.float32)
    for g in range(groups):
        o_ref[g] = acc[:, g * dim_head:(g + 1) * dim_head].astype(o_ref.dtype)


def pallas_proj_heads(x, wt, groups, dim_head, *, block_m=256):
    """x: (M, Din); wt: (Din, groups*dim_head) -> head-major (groups, M, dim_head)."""
    M, Din = x.shape
    Dout = wt.shape[1]
    assert Dout == groups * dim_head
    tm = _row_tile(M, block_m)
    grid = (pl.cdiv(M, tm),)
    kernel = functools.partial(_proj_heads_kernel, groups=groups, dim_head=dim_head)
    return pl.pallas_call(
        kernel,
        out_shape=jax.ShapeDtypeStruct((groups, M, dim_head), x.dtype),
        grid=grid,
        in_specs=[pl.BlockSpec((tm, Din), lambda i: (i, 0)),
                  pl.BlockSpec((Din, Dout), lambda i: (0, 0))],   # grid-invariant: resident
        out_specs=pl.BlockSpec((groups, tm, dim_head), lambda i: (0, i, 0)),
        compiler_params=pltpu.CompilerParams(dimension_semantics=("parallel",)),
    )(x, wt)


# --------------------- fused multi-head flash-attention ---------------------- #

def _flash_mha_kernel(q_ref, kv_ref, o_ref, m_sc, l_sc, acc_sc, *,
                      heads, extra_scale):
    ki = pl.program_id(2)

    @pl.when(ki == 0)
    def _init():
        m_sc[...] = jnp.full_like(m_sc, -jnp.inf)
        l_sc[...] = jnp.zeros_like(l_sc)
        acc_sc[...] = jnp.zeros_like(acc_sc)

    # All heads per grid step; heads is small & static -> unrolled 2-D MXU matmuls.
    # No lane slicing anywhere: every operand is a full-extent (T, Dh) tile.
    for h in range(heads):
        qh = q_ref[h, 0]                      # (TQ, Dh); softmax scale folded into Wq
        if extra_scale != 1.0:                # static: only for self.scale is not None
            qh = qh * extra_scale
        kh = kv_ref[0, h, 0]                  # (TK, Dh)
        vh = kv_ref[1, h, 0]                  # (TK, Dh)

        s = jnp.dot(qh, kh.T, preferred_element_type=jnp.float32)   # (TQ, TK) f32
        m_prev = m_sc[h]                      # (TQ, 1)
        m_new = jnp.maximum(m_prev, s.max(axis=-1, keepdims=True))
        alpha = jnp.exp(m_prev - m_new)
        p = jnp.exp(s - m_new)                # softmax math stays f32
        l_sc[h] = alpha * l_sc[h] + p.sum(axis=-1, keepdims=True)
        acc_sc[h] = alpha * acc_sc[h] + jnp.dot(
            p.astype(vh.dtype), vh, preferred_element_type=jnp.float32)
        m_sc[h] = m_new

    @pl.when(ki == pl.num_programs(2) - 1)
    def _finalize():
        inv_l = pl.reciprocal(l_sc[...], approx=True)   # EUP; normalizes (TQ, Dh) acc only
        for h in range(heads):
            o_ref[h, 0] = (acc_sc[h] * inv_l[h]).astype(o_ref.dtype)


def pallas_flash_attention(q, kv, *, extra_scale=1.0):
    """q: (H, B, Sq, Dh); kv: (2, H, B, Skv, Dh) -> (H, B, Sq, Dh)."""
    H, B, Sq, Dh = q.shape
    Skv = kv.shape[3]
    tq = _q_tile(Sq)
    tk = _kv_tile(Skv, H, Dh, jnp.dtype(q.dtype).itemsize)
    grid = (B, pl.cdiv(Sq, tq), Skv // tk)
    kernel = functools.partial(_flash_mha_kernel, heads=H,
                               extra_scale=float(extra_scale))
    return pl.pallas_call(
        kernel,
        out_shape=jax.ShapeDtypeStruct((H, B, Sq, Dh), q.dtype),
        grid=grid,
        in_specs=[pl.BlockSpec((H, 1, tq, Dh), lambda b, qi, ki: (0, b, qi, 0)),
                  pl.BlockSpec((2, H, 1, tk, Dh), lambda b, qi, ki: (0, 0, b, ki, 0))],
        out_specs=pl.BlockSpec((H, 1, tq, Dh), lambda b, qi, ki: (0, b, qi, 0)),
        scratch_shapes=[pltpu.VMEM((H, tq, 1), jnp.float32),     # running max
                        pltpu.VMEM((H, tq, 1), jnp.float32),     # running denom
                        pltpu.VMEM((H, tq, Dh), jnp.float32)],   # accumulator
        compiler_params=pltpu.CompilerParams(
            dimension_semantics=("parallel", "parallel", "arbitrary")),
    )(q, kv)


# ---------------- output projection: head-reduction + bias (to_out) ---------- #

def _out_proj_kernel(a_ref, w_ref, b_ref, o_ref, *, heads):
    # y = sum_h attn_h @ Wo_h + b  -> folds the head-merge into the reduction,
    # so no HBM transpose from head-major back to packed layout is needed.
    acc = jnp.dot(a_ref[0], w_ref[0], preferred_element_type=jnp.float32)
    for h in range(1, heads):
        acc = acc + jnp.dot(a_ref[h], w_ref[h], preferred_element_type=jnp.float32)
    o_ref[...] = (acc + b_ref[...].astype(jnp.float32)).astype(o_ref.dtype)


def pallas_out_proj(a, w_h, bias, *, block_m=256):
    """a: (H, M, Dh) head-major; w_h: (H, Dh, Dout); bias: (Dout,) -> (M, Dout)."""
    H, M, Dh = a.shape
    Dout = w_h.shape[2]
    tm = _row_tile(M, block_m)
    grid = (pl.cdiv(M, tm),)
    b2 = bias.reshape(1, Dout)
    kernel = functools.partial(_out_proj_kernel, heads=H)
    return pl.pallas_call(
        kernel,
        out_shape=jax.ShapeDtypeStruct((M, Dout), a.dtype),
        grid=grid,
        in_specs=[pl.BlockSpec((H, tm, Dh), lambda i: (0, i, 0)),
                  pl.BlockSpec((H, Dh, Dout), lambda i: (0, 0, 0)),   # resident weight
                  pl.BlockSpec((1, Dout), lambda i: (0, 0))],         # resident bias
        out_specs=pl.BlockSpec((tm, Dout), lambda i: (i, 0)),         # lane-dense store
        compiler_params=pltpu.CompilerParams(dimension_semantics=("parallel",)),
    )(a, w_h, b2)


# ------------------------------ module wrapper ------------------------------- #

def init_cross_attention_mm(key, query_dim, context_dim=None, heads=8, dim_head=64):
    context_dim = query_dim if context_dim is None else context_dim
    inner_dim = dim_head * heads
    k1, k2, k3, k4, k5 = jax.random.split(key, 5)
    s = 0.05
    params = {
        "wq": s * jax.random.normal(k1, (inner_dim, query_dim), jnp.float32),
        "wk": s * jax.random.normal(k2, (inner_dim, context_dim), jnp.float32),
        "wv": s * jax.random.normal(k3, (inner_dim, context_dim), jnp.float32),
        "wo": s * jax.random.normal(k4, (query_dim, inner_dim), jnp.float32),
        "bo": s * jax.random.normal(k5, (query_dim,), jnp.float32),
    }
    cfg = dict(heads=heads, dim_head=dim_head,
               default_scale=dim_head ** (-0.5), scale=None)
    return params, cfg


def pack_params(params, cfg, compute_dtype=jnp.float32):
    """One-time weight prep: transpose, fold softmax scale into Wq, fuse K/V,
    reshape Wo to head-major (H, Dh, query_dim)."""
    heads, dim_head = cfg["heads"], cfg["dim_head"]
    query_dim = params["wo"].shape[0]
    wq_t = jnp.transpose(params["wq"]) * cfg["default_scale"]   # fold softmax scale
    wk_t = jnp.transpose(params["wk"])
    wv_t = jnp.transpose(params["wv"])
    wo_h = jnp.transpose(params["wo"]).reshape(heads, dim_head, query_dim)
    return {
        "wq_t": wq_t.astype(compute_dtype),
        "wk_t": wk_t.astype(compute_dtype),
        "wv_t": wv_t.astype(compute_dtype),
        "wkv_t": jnp.concatenate([wk_t, wv_t], axis=1).astype(compute_dtype),
        "wo_h": wo_h.astype(compute_dtype),
        "bo": params["bo"].astype(compute_dtype),
    }


def cross_attention_mm_forward(packed, cfg, x, context=None, value=None,
                               mask=None, scale_mask=None):
    heads, dim_head = cfg["heads"], cfg["dim_head"]
    inner = heads * dim_head
    dt = packed["wq_t"].dtype

    x = x.astype(dt)
    B, Sq, _ = x.shape
    ctx = x if context is None else context.astype(dt)
    Skv = ctx.shape[1]

    # Q projection -> head-major (H, B, Sq, Dh); softmax scale pre-folded into Wq.
    q = pallas_proj_heads(x.reshape(B * Sq, -1), packed["wq_t"], heads, dim_head)
    q = q.reshape(heads, B, Sq, dim_head)

    if value is None:
        # Fused K/V projection: one HBM read of `context`, head-major output.
        kv = pallas_proj_heads(ctx.reshape(B * Skv, -1), packed["wkv_t"],
                               2 * heads, dim_head)
        kv = kv.reshape(2, heads, B, Skv, dim_head)   # [0]=K heads, [1]=V heads
    else:
        value = value.astype(dt)
        assert value.shape[1] == Skv, "k and v must share the same sequence length"
        k = pallas_proj_heads(ctx.reshape(B * Skv, -1), packed["wk_t"],
                              heads, dim_head).reshape(heads, B, Skv, dim_head)
        v = pallas_proj_heads(value.reshape(B * Skv, -1), packed["wv_t"],
                              heads, dim_head).reshape(heads, B, Skv, dim_head)
        kv = jnp.stack([k, v], axis=0)

    # Scalar `self.scale` applied to k folds exactly into the softmax scale.
    extra_scale = 1.0 if cfg.get("scale") is None else float(cfg["scale"])
    if scale_mask is not None:
        # TODO(synk): tensor scale_mask on k kept as a rare-path XLA multiply.
        sm = jnp.broadcast_to(scale_mask.astype(dt), (B, Skv, inner))
        sm = sm.reshape(B, Skv, heads, dim_head).transpose(2, 0, 1, 3)
        kv = kv.at[0].multiply(sm)
    # TODO(synk): additive attention `mask` path not implemented (mask is None in
    # CrossAttentionMM's default usage).

    out = pallas_flash_attention(q, kv, extra_scale=extra_scale)  # (H, B, Sq, Dh)

    # to_out: head-merge folded into the output-projection reduction over heads.
    out = out.reshape(heads, B * Sq, dim_head)
    y = pallas_out_proj(out, packed["wo_h"], packed["bo"])        # (B*Sq, query_dim)
    # Dropout(p=0.0) is identity.
    return y.reshape(B, Sq, -1)


# ----------------------------- pure-JAX reference ---------------------------- #

def _reference_forward(params, cfg, x, context):
    heads, dim_head = cfg["heads"], cfg["dim_head"]
    B, Nq, _ = x.shape
    Nk = context.shape[1]
    q = x @ params["wq"].T
    k = context @ params["wk"].T
    v = context @ params["wv"].T

    def split(t, n):
        return (t.reshape(B, n, heads, dim_head)
                 .transpose(0, 2, 1, 3)
                 .reshape(B * heads, n, dim_head))

    qh, kh, vh = split(q, Nq), split(k, Nk), split(v, Nk)
    sim = jnp.einsum("bid,bjd->bij", qh, kh) * cfg["default_scale"]
    attn = jax.nn.softmax(sim, axis=-1)
    oh = jnp.einsum("bij,bjd->bid", attn, vh)
    out = (oh.reshape(B, heads, Nq, dim_head)
             .transpose(0, 2, 1, 3)
             .reshape(B, Nq, heads * dim_head))
    return out @ params["wo"].T + params["bo"]


# ------------------------------------ main ----------------------------------- #

if __name__ == "__main__":
    key = jax.random.PRNGKey(0)
    kp, kx, kc = jax.random.split(key, 3)

    # Small config: query_dim=32, context_dim=32, heads=2, dim_head=16 -> inner=32
    query_dim, context_dim, heads, dim_head = 32, 32, 2, 16
    B, Sq, Skv = 2, 16, 8

    params, cfg = init_cross_attention_mm(kp, query_dim, context_dim,
                                          heads=heads, dim_head=dim_head)

    x = jax.random.normal(kx, (B, Sq, query_dim), jnp.float32)
    context = jax.random.normal(kc, (B, Skv, context_dim), jnp.float32)

    ref = _reference_forward(params, cfg, x, context)

    # f32 path (tight check; softmax + accumulation are f32 in-kernel).
    packed_f32 = pack_params(params, cfg, compute_dtype=jnp.float32)
    out = cross_attention_mm_forward(packed_f32, cfg, x, context=context)
    out = jax.block_until_ready(out)
    assert out.shape == (B, Sq, query_dim)
    assert jnp.allclose(out, ref, atol=2e-3, rtol=2e-3), "f32 mismatch vs reference"

    # bf16 MXU-operand path (f32 accumulation / softmax inside kernels), loose check.
    packed_bf16 = pack_params(params, cfg, compute_dtype=jnp.bfloat16)
    out_bf16 = cross_attention_mm_forward(packed_bf16, cfg, x, context=context)
    out_bf16 = jax.block_until_ready(out_bf16)
    err = jnp.max(jnp.abs(out_bf16.astype(jnp.float32) - ref))
    assert err < 1e-1, f"bf16 mismatch vs reference: max abs err {err}"

    print("KERNEL_OK")
</pallas_src>

<mosaic_0001>
module attributes {stable_mosaic.version = 11 : i64} {
  func.func @_proj_heads_kernel(%arg0: i32, %arg1: memref<32x32xf32, #tpu.memory_space<vmem>>, %arg2: memref<32x32xf32, #tpu.memory_space<vmem>>, %arg3: memref<2x32x16xf32, #tpu.memory_space<vmem>>) attributes {dimension_semantics = [#tpu.dimension_semantics<parallel>], iteration_bounds = array<i64: 1>, scalar_prefetch = 0 : i64, scratch_operands = 0 : i64, tpu.core_type = #tpu.core_type<tc>, window_params = [{transform_indices = @transform_0, window_bounds = array<i64: 32, 32>}, {pipeline_mode = #tpu.pipeline_mode<synchronous>, transform_indices = @transform_1, window_bounds = array<i64: 32, 32>}, {transform_indices = @transform_2, window_bounds = array<i64: 2, 32, 16>}]} {
    %c0 = arith.constant 0 : index
    %c0_0 = arith.constant 0 : index
    %0 = vector.load %arg1[%c0, %c0_0] : memref<32x32xf32, #tpu.memory_space<vmem>>, vector<32x32xf32>
    %c0_1 = arith.constant 0 : index
    %c0_2 = arith.constant 0 : index
    %1 = vector.load %arg2[%c0_1, %c0_2] : memref<32x32xf32, #tpu.memory_space<vmem>>, vector<32x32xf32>
    %cst = arith.constant dense<0.000000e+00> : vector<32x32xf32>
    %2 = tpu.matmul %0, %1, %cst {dimension_numbers = #tpu.dot_dimension_numbers<[1], [0], [0], [1], [0, 0, 1, 1], [], []>} : vector<32x32xf32>, vector<32x32xf32>, vector<32x32xf32> -> vector<32x32xf32>
    %3 = vector.extract_strided_slice %2 {offsets = [0, 0], sizes = [32, 16], strides = [1, 1]} : vector<32x32xf32> to vector<32x16xf32>
    %c0_3 = arith.constant 0 : index
    %c0_4 = arith.constant 0 : index
    %c0_5 = arith.constant 0 : index
    %4 = vector.load %arg3[%c0_3, %c0_4, %c0_5] : memref<2x32x16xf32, #tpu.memory_space<vmem>>, vector<1x32x16xf32>
    %5 = vector.shape_cast %4 : vector<1x32x16xf32> to vector<32x16xf32>
    %6 = vector.shape_cast %3 : vector<32x16xf32> to vector<1x32x16xf32>
    tpu.vector_store %arg3[%c0_3, %c0_4, %c0_5], %6 {strides = array<i32>} : memref<2x32x16xf32, #tpu.memory_space<vmem>>, vector<1x32x16xf32>,
    %7 = vector.extract_strided_slice %2 {offsets = [0, 16], sizes = [32, 16], strides = [1, 1]} : vector<32x32xf32> to vector<32x16xf32>
    %c1 = arith.constant 1 : index
    %c0_6 = arith.constant 0 : index
    %c0_7 = arith.constant 0 : index
    %8 = vector.load %arg3[%c1, %c0_6, %c0_7] : memref<2x32x16xf32, #tpu.memory_space<vmem>>, vector<1x32x16xf32>
    %9 = vector.shape_cast %8 : vector<1x32x16xf32> to vector<32x16xf32>
    %10 = vector.shape_cast %7 : vector<32x16xf32> to vector<1x32x16xf32>
    tpu.vector_store %arg3[%c1, %c0_6, %c0_7], %10 {strides = array<i32>} : memref<2x32x16xf32, #tpu.memory_space<vmem>>, vector<1x32x16xf32>,
    return
  }
  func.func @transform_0(%arg0: i32) -> (i32, i32) {
    %c0_i32 = arith.constant 0 : i32
    %c0_i32_0 = arith.constant 0 : i32
    return %arg0, %c0_i32 : i32, i32
  }
  func.func @transform_1(%arg0: i32) -> (i32, i32) {
    %c0_i32 = arith.constant 0 : i32
    %c0_i32_0 = arith.constant 0 : i32
    %c0_i32_1 = arith.constant 0 : i32
    return %c0_i32, %c0_i32_0 : i32, i32
  }
  func.func @transform_2(%arg0: i32) -> (i32, i32, i32) {
    %c0_i32 = arith.constant 0 : i32
    %c0_i32_0 = arith.constant 0 : i32
    %c0_i32_1 = arith.constant 0 : i32
    return %c0_i32, %arg0, %c0_i32_0 : i32, i32, i32
  }
}

</mosaic_0001>

<llo_original>
// kernel: tpu_custom_call.1
$region0: #{tpu_custom_call.1}
  #allocation0 [shape = 'u32[]', space=smem, size = 0x4, offset = 0x4, fixed_abs, tag = 'smem constant byte address 0x4 - core index']
  #allocation1 [shape = 'u32[144,128]{1,0:T(1,128)}', space=vmem, size = 0x12000, scoped, tag = 'internal scratch']
  %s0 = inlined_call_operand.hbm [shape: f32[32,32], index: 0, kind: input, shape index: {}]
  %s1 = inlined_call_operand.hbm [shape: f32[32,32], index: 1, kind: input, shape index: {}]
  %s2 = inlined_call_operand.vmem [shape: f32[2,32,16], index: 2, kind: output, shape index: {}]
  %s3 = sld [smem:[#allocation0]]
  $region26: #{tpu_custom_call.1} parent=0
    _
  %s5 = ssub.s32 1, %s3
  %s6 = scalar_select 0, %s5, %s3
  $region1: #{tpu_custom_call.1} parent=0
    #allocation2 [shape = 'u8[16384]{0}', space=vmem, size = 0x4000, scoped, tag = 'input window, operand 0, single buffered']
    #allocation3 [shape = 's32[1]{0}', space=sflag, size = 0x4, scoped, tag = 'scoped memory for tpu_custom_call.1']
    #allocation4 [shape = 'u8[16384]{0}', space=vmem, size = 0x4000, scoped, tag = 'input window, operand 1, single buffered']
    #allocation5 [shape = 's32[1]{0}', space=sflag, size = 0x4, scoped, tag = 'scoped memory for tpu_custom_call.1']
    %7 = vsyncpa [#allocation3], 0
    %8 = vsyncpa [#allocation5], 0
    // Predicated region
    $region2: #{tpu_custom_call.1} parent=1 // pred_check
      _
    $region3: #{tpu_custom_call.1} parent=1 // pred_check_branch
      %10 = sbr.rel (0) target = $region5
    $region4: #{tpu_custom_call.1} parent=1 // pred_region
      %s12 = ssub.s32 512, 512
      %13 = vsyncadd [#allocation3], %s12
      %s14 = sshll.u32 [#allocation2], 4
      %s15 = int_to_ptr.vmem [resolvable:$true] %s14
      %20 = dma.hbm_to_vmem [thread:$0]  %s0, 512, %s15, [#allocation3], 128, 128, 8
    $region5: #{tpu_custom_call.1} parent=1 // pred_fallthru
      _
    // Predicated region
    $region6: #{tpu_custom_call.1} parent=1 // pred_check
      _
    $region7: #{tpu_custom_call.1} parent=1 // pred_check_branch
      %22 = sbr.rel (0) target = $region9
    $region8: #{tpu_custom_call.1} parent=1 // pred_region
      %s24 = ssub.s32 512, 512
      %25 = vsyncadd [#allocation5], %s24
      %s26 = sshll.u32 [#allocation4], 4
      %s27 = int_to_ptr.vmem [resolvable:$true] %s26
      %32 = dma.hbm_to_vmem [thread:$0]  %s1, 512, %s27, [#allocation5], 128, 128, 8
    $region9: #{tpu_custom_call.1} parent=1 // pred_fallthru
      _
    // Predicated region
    $region10: #{tpu_custom_call.1} parent=1 // pred_check
      _
    $region11: #{tpu_custom_call.1} parent=1 // pred_check_branch
      %34 = sbr.rel (0) target = $region13
    $region12: #{tpu_custom_call.1} parent=1 // pred_region
      %35 = dma.done [#allocation3], 512
    $region13: #{tpu_custom_call.1} parent=1 // pred_fallthru
      _
    // Predicated region
    $region14: #{tpu_custom_call.1} parent=1 // pred_check
      _
    $region15: #{tpu_custom_call.1} parent=1 // pred_check_branch
      %37 = sbr.rel (0) target = $region17
    $region16: #{tpu_custom_call.1} parent=1 // pred_region
      %38 = dma.done [#allocation5], 512
    $region17: #{tpu_custom_call.1} parent=1 // pred_fallthru
      _
    %v39 = vld [vmem:[#allocation2] sm:$0xff]
    %v40 = vld [vmem:[#allocation2 + $0x8] sm:$0xff]
    %v41 = vld [vmem:[#allocation2 + $0x10] sm:$0xff]
    %v42 = vld [vmem:[#allocation2 + $0x18] sm:$0xff]
    %v43 = vld [vmem:[#allocation4] sm:$0xff]
    %v44 = vld [vmem:[#allocation4 + $0x8] sm:$0xff]
    %v45 = vld [vmem:[#allocation4 + $0x10] sm:$0xff]
    %v46 = vld [vmem:[#allocation4 + $0x18] sm:$0xff]
    %vm47 = vcmask 261120
    %v49 = vsel %vm47, %v39, 0
    %v52 = vsel %vm47, %v40, 0
    %v55 = vsel %vm47, %v41, 0
    %v58 = vsel %vm47, %v42, 0
    %60 = vmatprep.subr.mxu0 0.0
    %61 = vmatpush1.msra.mxu0 0.0
    %62 = vmatprep.subr.mxu0 0.0
    %63 = vmatpush1.msra.mxu0 0.0
    %64 = vmatprep.subr.mxu0 0.0
    %65 = vmatpush1.msra.mxu0 0.0
    %66 = vmatprep.subr.mxu0 0.0
    %67 = vmatpush1.msra.mxu0 0.0
    %68 = vmatprep.subr.mxu0 0.0
    %69 = vmatpush1.msra.mxu0 0.0
    %70 = vmatprep.subr.mxu0 0.0
    %71 = vmatpush1.msra.mxu0 0.0
    %72 = vmatprep.subr.mxu0 0.0
    %73 = vmatpush1.msra.mxu0 0.0
    %74 = vmatprep.subr.mxu0 0.0
    %75 = vmatpush1.msra.mxu0 0.0
    %76 = vmatprep.subr.mxu0 0.0
    %77 = vmatpush1.msra.mxu0 0.0
    %78 = vmatprep.subr.mxu0 0.0
    %79 = vmatpush1.msra.mxu0 0.0
    %80 = vmatprep.subr.mxu0 0.0
    %81 = vmatpush1.msra.mxu0 0.0
    %82 = vmatprep.subr.mxu0 0.0
    %83 = vmatpush1.msra.mxu0 0.0
    %84 = vmatprep.subr.mxu0 0.0
    %85 = vmatpush1.msra.mxu0 %v46
    %86 = vmatprep.subr.mxu0 0.0
    %87 = vmatpush1.msra.mxu0 %v45
    %88 = vmatprep.subr.mxu0 0.0
    %89 = vmatpush1.msra.mxu0 %v44
    %90 = vmatprep.subr.mxu0 0.0
    %91 = vmatpush1.msra.mxu0 %v43
    %92 = vmatprep.subr.mxu0 0.0
    %93 = vmatpush2.msra.mxu0 0.0
    %94 = vmatprep.subr.mxu0 0.0
    %95 = vmatpush2.msra.mxu0 0.0
    %96 = vmatprep.subr.mxu0 0.0
    %97 = vmatpush2.msra.mxu0 0.0
    %98 = vmatprep.subr.mxu0 0.0
    %99 = vmatpush2.msra.mxu0 0.0
    %100 = vmatprep.subr.mxu0 0.0
    %101 = vmatpush2.msra.mxu0 0.0
    %102 = vmatprep.subr.mxu0 0.0
    %103 = vmatpush2.msra.mxu0 0.0
    %104 = vmatprep.subr.mxu0 0.0
    %105 = vmatpush2.msra.mxu0 0.0
    %106 = vmatprep.subr.mxu0 0.0
    %107 = vmatpush2.msra.mxu0 0.0
    %108 = vmatprep.subr.mxu0 0.0
    %109 = vmatpush2.msra.mxu0 0.0
    %110 = vmatprep.subr.mxu0 0.0
    %111 = vmatpush2.msra.mxu0 0.0
    %112 = vmatprep.subr.mxu0 0.0
    %113 = vmatpush2.msra.mxu0 0.0
    %114 = vmatprep.subr.mxu0 0.0
    %115 = vmatpush2.msra.mxu0 0.0
    %116 = vmatprep.subr.mxu0 0.0
    %117 = vmatpush2.msra.mxu0 0.0
    %118 = vmatprep.subr.mxu0 0.0
    %119 = vmatpush2.msra.mxu0 0.0
    %120 = vmatprep.subr.mxu0 0.0
    %121 = vmatpush2.msra.mxu0 0.0
    %122 = vmatprep.subr.mxu0 0.0
    %123 = vmatpush2.msra.mxu0 0.0
    %124 = vmatprep.mubr.f32.mxu0 0.0
    %125 = vmatmul.mubr.f32.gmra.mxu0 %v49
    %v126 = vpop.f32.mrf.mxu0
    %v127 = vadd.f32 0.0, %v126
    %v128 = vpop.f32.mrf.mxu0
    %129 = vmatprep.mubr.f32.mxu0 0.0
    %130 = vmatmul.mubr.f32.gmra.mxu0 %v52
    %v131 = vpop.f32.mrf.mxu0
    %v132 = vadd.f32 0.0, %v131
    %v133 = vpop.f32.mrf.mxu0
    %134 = vmatprep.mubr.f32.mxu0 0.0
    %135 = vmatmul.mubr.f32.gmra.mxu0 %v55
    %v136 = vpop.f32.mrf.mxu0
    %v137 = vadd.f32 0.0, %v136
    %v138 = vpop.f32.mrf.mxu0
    %139 = vmatprep.mubr.f32.mxu0 0.0
    %140 = vmatmul.mubr.f32.gmra.mxu0 %v58
    %v141 = vpop.f32.mrf.mxu0
    %v142 = vadd.f32 0.0, %v141
    %v143 = vpop.f32.mrf.mxu0
    %144 = vdwg.mxu0
    %vm145 = vcmask 130048
    %146 = vst.msk [vmem:[%s2] sm:$0xff] %vm145, %v127
    %147 = vst.msk [vmem:[%s2 + $0x8] sm:$0xff] %vm145, %v132
    %148 = vst.msk [vmem:[%s2 + $0x10] sm:$0xff] %vm145, %v137
    %149 = vst.msk [vmem:[%s2 + $0x18] sm:$0xff] %vm145, %v142
    %154 = vrot.lane.b32.xlu0 %v127, 112
    %v155 = vpop.permute.xlu0 %154
    %156 = vrot.lane.b32.xlu0 %v132, 112
    %v157 = vpop.permute.xlu0 %156
    %158 = vrot.lane.b32.xlu0 %v137, 112
    %v159 = vpop.permute.xlu0 %158
    %160 = vrot.lane.b32.xlu0 %v142, 112
    %v161 = vpop.permute.xlu0 %160
    %s166 = scalar_lea.vmem %s2, 32
    %167 = vst.msk [vmem:[%s166] sm:$0xff] %vm145, %v155
    %168 = vst.msk [vmem:[%s166 + $0x8] sm:$0xff] %vm145, %v157
    %169 = vst.msk [vmem:[%s166 + $0x10] sm:$0xff] %vm145, %v159
    %170 = vst.msk [vmem:[%s166 + $0x18] sm:$0xff] %vm145, %v161
    // Predicated region
    $region18: #{tpu_custom_call.1} parent=1 // pred_check
      _
    $region19: #{tpu_custom_call.1} parent=1 // pred_check_branch
      %172 = sbr.rel (0) target = $region21
    $region20: #{tpu_custom_call.1} parent=1 // pred_region
      _
    $region21: #{tpu_custom_call.1} parent=1 // pred_fallthru
      _
    // Predicated region
    $region22: #{tpu_custom_call.1} parent=1 // pred_check
      _
    $region23: #{tpu_custom_call.1} parent=1 // pred_check_branch
      %174 = sbr.rel (0) target = $region25
    $region24: #{tpu_custom_call.1} parent=1 // pred_region
      _
    $region25: #{tpu_custom_call.1} parent=1 // pred_fallthru
      _
    %175 = vsyncpa [#allocation3], 1
    %176 = vsyncpa [#allocation5], 1

</llo_original>
